<compile_context>
chip_gen: v5e
topology: v5e:2x2
jax: 0.10.0
libtpu: 0.0.40
codegen_flags: <defaults>
</compile_context>

<pallas_src>
import functools

import jax
import jax.numpy as jnp
from jax import lax
from jax.experimental import pallas as pl
from jax.experimental.pallas import tpu as pltpu


HEAD_WIDTH = 128   # fused hidden width of the two heads: 64 (value) + 64 (advantage)
OUT_LANES = 128    # lane-dense padded output width; col 0 = V, cols 1:1+A = advantage


def _dqn_kernel(num_actions,
                x_ref,
                w1_ref, b1_ref, w2_ref, b2_ref,
                wh1_ref, bh1_ref, wh2_ref, bh2_ref,
                out_ref):
    x = x_ref[...]                                                   # (TB, in_dim)

    # Feature trunk: Linear -> ReLU -> Linear -> ReLU
    h = jnp.dot(x, w1_ref[...], preferred_element_type=jnp.float32) + b1_ref[...]
    h = jnp.maximum(h, 0.0)                                          # (TB, 64)
    h = jnp.dot(h, w2_ref[...], preferred_element_type=jnp.float32) + b2_ref[...]
    h = jnp.maximum(h, 0.0)                                          # (TB, 128)

    # Fused head layer 1: lanes 0:64 = value hidden, lanes 64:128 = advantage hidden
    heads = jnp.dot(h, wh1_ref[...], preferred_element_type=jnp.float32) + bh1_ref[...]
    heads = jnp.maximum(heads, 0.0)                                  # (TB, 128)

    # Fused head layer 2 (block-diagonal): col 0 = V, cols 1:1+A = advantage, rest 0
    va = jnp.dot(heads, wh2_ref[...], preferred_element_type=jnp.float32) + bh2_ref[...]

    v = va[:, 0:1]                                                   # (TB, 1)
    col = lax.broadcasted_iota(jnp.int32, va.shape, 1)
    action_mask = (col >= 1) & (col < 1 + num_actions)
    a_sum = jnp.sum(jnp.where(action_mask, va, 0.0), axis=1, keepdims=True)
    a_mean = a_sum * (1.0 / num_actions)

    # Lane-dense store of the full 128-wide slab; valid Q lives in cols 1:1+A
    # (garbage in the padded lanes is sliced off by the wrapper).
    out_ref[...] = v + (va - a_mean)


def dqn_forward(x, params, *, tile_b=128):
    """x: (B, input_dim) float32; params: dict of (in, out) weights and (1, out) biases."""
    B, input_dim = x.shape
    num_actions = params["wa2"].shape[1]

    # --- one-time weight fusion (plain JAX, hoisted out of the kernel) -------
    w1, b1 = params["w1"], params["b1"]
    w2, b2 = params["w2"], params["b2"]
    # Heads layer 1: [wv1 | wa1] -> (128, 128), lane-dense.
    wh1 = jnp.concatenate([params["wv1"], params["wa1"]], axis=1)
    bh1 = jnp.concatenate([params["bv1"], params["ba1"]], axis=1)
    # Heads layer 2: block-diagonal (128, 128); wv2 feeds col 0, wa2 feeds cols 1:1+A.
    wh2 = jnp.zeros((HEAD_WIDTH, OUT_LANES), jnp.float32)
    wh2 = wh2.at[0:64, 0:1].set(params["wv2"])
    wh2 = wh2.at[64:128, 1:1 + num_actions].set(params["wa2"])
    bh2 = jnp.zeros((1, OUT_LANES), jnp.float32)
    bh2 = bh2.at[0:1, 0:1].set(params["bv2"])
    bh2 = bh2.at[0:1, 1:1 + num_actions].set(params["ba2"])
    # TODO(synk): for v6e/v7x, cast weights to bf16 here (keep f32 accumulation).

    # --- batch tiling (sublane dim must be a multiple of 8) ------------------
    tile_b = max(8, min(tile_b, ((B + 7) // 8) * 8))
    b_pad = ((B + tile_b - 1) // tile_b) * tile_b
    x_p = jnp.pad(x, ((0, b_pad - B), (0, 0))) if b_pad != B else x
    grid = (b_pad // tile_b,)

    weight_ops = (w1, b1, w2, b2, wh1, bh1, wh2, bh2)

    def resident(arr):
        # Full-array block, constant index_map -> stays VMEM-resident across grid steps.
        return pl.BlockSpec(arr.shape, lambda i: (0,) * arr.ndim)

    in_specs = [pl.BlockSpec((tile_b, input_dim), lambda i: (i, 0))]
    in_specs += [resident(w) for w in weight_ops]
    out_specs = pl.BlockSpec((tile_b, OUT_LANES), lambda i: (i, 0))

    weight_bytes = 4 * sum(int(w.size) for w in weight_ops)
    flops = 2 * b_pad * (input_dim * 64 + 64 * 128 + 128 * HEAD_WIDTH
                         + HEAD_WIDTH * OUT_LANES)
    bytes_io = 4 * (b_pad * input_dim + b_pad * OUT_LANES) + weight_bytes
    vmem_bytes = int(weight_bytes
                     + 2 * 4 * tile_b * (input_dim + OUT_LANES)  # double-buffered x / out
                     + 4 * 4 * tile_b * 128                      # intermediates headroom
                     + (2 << 20))

    q_pad = pl.pallas_call(
        functools.partial(_dqn_kernel, num_actions),
        out_shape=jax.ShapeDtypeStruct((b_pad, OUT_LANES), jnp.float32),
        grid=grid,
        in_specs=in_specs,
        out_specs=out_specs,
        compiler_params=pltpu.CompilerParams(
            dimension_semantics=("parallel",),
            vmem_limit_bytes=vmem_bytes,
        ),
        cost_estimate=pl.CostEstimate(
            flops=flops, transcendentals=0, bytes_accessed=bytes_io),
    )(x_p, *weight_ops)

    return q_pad[:B, 1:1 + num_actions]


def init_params(key, input_dim, num_actions):
    """Deterministic synthetic parameters. Weights stored as (in, out)."""
    def linear(k, fan_in, fan_out):
        kw, kb = jax.random.split(k)
        bound = 1.0 / jnp.sqrt(fan_in)
        w = jax.random.uniform(kw, (fan_in, fan_out), jnp.float32, -bound, bound)
        b = jax.random.uniform(kb, (1, fan_out), jnp.float32, -bound, bound)
        return w, b

    keys = jax.random.split(key, 6)
    w1, b1 = linear(keys[0], input_dim, 64)
    w2, b2 = linear(keys[1], 64, 128)
    wv1, bv1 = linear(keys[2], 128, 64)
    wv2, bv2 = linear(keys[3], 64, 1)
    wa1, ba1 = linear(keys[4], 128, 64)
    wa2, ba2 = linear(keys[5], 64, num_actions)
    return dict(w1=w1, b1=b1, w2=w2, b2=b2,
                wv1=wv1, bv1=bv1, wv2=wv2, bv2=bv2,
                wa1=wa1, ba1=ba1, wa2=wa2, ba2=ba2)


def dqn_reference(x, p):
    relu = lambda t: jnp.maximum(t, 0.0)
    h = relu(x @ p["w1"] + p["b1"])
    h = relu(h @ p["w2"] + p["b2"])
    v = relu(h @ p["wv1"] + p["bv1"]) @ p["wv2"] + p["bv2"]
    a = relu(h @ p["wa1"] + p["ba1"]) @ p["wa2"] + p["ba2"]
    return v + (a - a.mean(axis=1, keepdims=True))


if __name__ == "__main__":
    key = jax.random.PRNGKey(0)
    k_params, k_x = jax.random.split(key)

    batch = 8
    input_dim = 16
    num_actions = 8

    params = init_params(k_params, input_dim, num_actions)
    x = jax.random.normal(k_x, (batch, input_dim), jnp.float32)

    q = dqn_forward(x, params)
    q = jax.block_until_ready(q)

    q_ref = dqn_reference(x, params)
    assert q.shape == (batch, num_actions)
    assert jnp.allclose(q, q_ref, atol=1e-4, rtol=1e-4)

    print("KERNEL_OK")
</pallas_src>

<mosaic_0001>
module attributes {stable_mosaic.version = 11 : i64} {
  func.func @_dqn_kernel(%arg0: i32, %arg1: memref<8x16xf32, #tpu.memory_space<vmem>>, %arg2: memref<16x64xf32, #tpu.memory_space<vmem>>, %arg3: memref<1x64xf32, #tpu.memory_space<vmem>>, %arg4: memref<64x128xf32, #tpu.memory_space<vmem>>, %arg5: memref<1x128xf32, #tpu.memory_space<vmem>>, %arg6: memref<128x128xf32, #tpu.memory_space<vmem>>, %arg7: memref<1x128xf32, #tpu.memory_space<vmem>>, %arg8: memref<128x128xf32, #tpu.memory_space<vmem>>, %arg9: memref<1x128xf32, #tpu.memory_space<vmem>>, %arg10: memref<8x128xf32, #tpu.memory_space<vmem>>) attributes {dimension_semantics = [#tpu.dimension_semantics<parallel>], iteration_bounds = array<i64: 1>, scalar_prefetch = 0 : i64, scratch_operands = 0 : i64, tpu.core_type = #tpu.core_type<tc>, window_params = [{transform_indices = @transform_0, window_bounds = array<i64: 8, 16>}, {pipeline_mode = #tpu.pipeline_mode<synchronous>, transform_indices = @transform_1, window_bounds = array<i64: 16, 64>}, {pipeline_mode = #tpu.pipeline_mode<synchronous>, transform_indices = @transform_2, window_bounds = array<i64: 1, 64>}, {pipeline_mode = #tpu.pipeline_mode<synchronous>, transform_indices = @transform_3, window_bounds = array<i64: 64, 128>}, {pipeline_mode = #tpu.pipeline_mode<synchronous>, transform_indices = @transform_4, window_bounds = array<i64: 1, 128>}, {pipeline_mode = #tpu.pipeline_mode<synchronous>, transform_indices = @transform_5, window_bounds = array<i64: 128, 128>}, {pipeline_mode = #tpu.pipeline_mode<synchronous>, transform_indices = @transform_6, window_bounds = array<i64: 1, 128>}, {pipeline_mode = #tpu.pipeline_mode<synchronous>, transform_indices = @transform_7, window_bounds = array<i64: 128, 128>}, {pipeline_mode = #tpu.pipeline_mode<synchronous>, transform_indices = @transform_8, window_bounds = array<i64: 1, 128>}, {transform_indices = @transform_9, window_bounds = array<i64: 8, 128>}]} {
    %c0 = arith.constant 0 : index
    %c0_0 = arith.constant 0 : index
    %0 = vector.load %arg1[%c0, %c0_0] : memref<8x16xf32, #tpu.memory_space<vmem>>, vector<8x16xf32>
    %c0_1 = arith.constant 0 : index
    %c0_2 = arith.constant 0 : index
    %1 = vector.load %arg2[%c0_1, %c0_2] : memref<16x64xf32, #tpu.memory_space<vmem>>, vector<16x64xf32>
    %cst = arith.constant dense<0.000000e+00> : vector<8x64xf32>
    %2 = tpu.matmul %0, %1, %cst {dimension_numbers = #tpu.dot_dimension_numbers<[1], [0], [0], [1], [0, 0, 1, 1], [], []>} : vector<8x16xf32>, vector<16x64xf32>, vector<8x64xf32> -> vector<8x64xf32>
    %c0_3 = arith.constant 0 : index
    %c0_4 = arith.constant 0 : index
    %3 = vector.load %arg3[%c0_3, %c0_4] : memref<1x64xf32, #tpu.memory_space<vmem>>, vector<1x64xf32>
    %4 = vector.broadcast %3 : vector<1x64xf32> to vector<8x64xf32>
    %5 = arith.addf %2, %4 : vector<8x64xf32>
    %cst_5 = arith.constant 0.000000e+00 : f32
    %6 = vector.broadcast %cst_5 : f32 to vector<8x64xf32>
    %7 = arith.maximumf %5, %6 : vector<8x64xf32>
    %c0_6 = arith.constant 0 : index
    %c0_7 = arith.constant 0 : index
    %8 = vector.load %arg4[%c0_6, %c0_7] : memref<64x128xf32, #tpu.memory_space<vmem>>, vector<64x128xf32>
    %cst_8 = arith.constant dense<0.000000e+00> : vector<8x128xf32>
    %9 = tpu.matmul %7, %8, %cst_8 {dimension_numbers = #tpu.dot_dimension_numbers<[1], [0], [0], [1], [0, 0, 1, 1], [], []>} : vector<8x64xf32>, vector<64x128xf32>, vector<8x128xf32> -> vector<8x128xf32>
    %c0_9 = arith.constant 0 : index
    %c0_10 = arith.constant 0 : index
    %10 = vector.load %arg5[%c0_9, %c0_10] : memref<1x128xf32, #tpu.memory_space<vmem>>, vector<1x128xf32>
    %11 = vector.broadcast %10 : vector<1x128xf32> to vector<8x128xf32>
    %12 = arith.addf %9, %11 : vector<8x128xf32>
    %cst_11 = arith.constant 0.000000e+00 : f32
    %13 = vector.broadcast %cst_11 : f32 to vector<8x128xf32>
    %14 = arith.maximumf %12, %13 : vector<8x128xf32>
    %c0_12 = arith.constant 0 : index
    %c0_13 = arith.constant 0 : index
    %15 = vector.load %arg6[%c0_12, %c0_13] : memref<128x128xf32, #tpu.memory_space<vmem>>, vector<128x128xf32>
    %cst_14 = arith.constant dense<0.000000e+00> : vector<8x128xf32>
    %16 = tpu.matmul %14, %15, %cst_14 {dimension_numbers = #tpu.dot_dimension_numbers<[1], [0], [0], [1], [0, 0, 1, 1], [], []>} : vector<8x128xf32>, vector<128x128xf32>, vector<8x128xf32> -> vector<8x128xf32>
    %c0_15 = arith.constant 0 : index
    %c0_16 = arith.constant 0 : index
    %17 = vector.load %arg7[%c0_15, %c0_16] : memref<1x128xf32, #tpu.memory_space<vmem>>, vector<1x128xf32>
    %18 = vector.broadcast %17 : vector<1x128xf32> to vector<8x128xf32>
    %19 = arith.addf %16, %18 : vector<8x128xf32>
    %cst_17 = arith.constant 0.000000e+00 : f32
    %20 = vector.broadcast %cst_17 : f32 to vector<8x128xf32>
    %21 = arith.maximumf %19, %20 : vector<8x128xf32>
    %c0_18 = arith.constant 0 : index
    %c0_19 = arith.constant 0 : index
    %22 = vector.load %arg8[%c0_18, %c0_19] : memref<128x128xf32, #tpu.memory_space<vmem>>, vector<128x128xf32>
    %cst_20 = arith.constant dense<0.000000e+00> : vector<8x128xf32>
    %23 = tpu.matmul %21, %22, %cst_20 {dimension_numbers = #tpu.dot_dimension_numbers<[1], [0], [0], [1], [0, 0, 1, 1], [], []>} : vector<8x128xf32>, vector<128x128xf32>, vector<8x128xf32> -> vector<8x128xf32>
    %c0_21 = arith.constant 0 : index
    %c0_22 = arith.constant 0 : index
    %24 = vector.load %arg9[%c0_21, %c0_22] : memref<1x128xf32, #tpu.memory_space<vmem>>, vector<1x128xf32>
    %25 = vector.broadcast %24 : vector<1x128xf32> to vector<8x128xf32>
    %26 = arith.addf %23, %25 : vector<8x128xf32>
    %27 = vector.extract_strided_slice %26 {offsets = [0, 0], sizes = [8, 1], strides = [1, 1]} : vector<8x128xf32> to vector<8x1xf32>
    %28 = tpu.iota {dimensions = array<i32: 1>} : vector<8x128xi32>
    %c1_i32 = arith.constant 1 : i32
    %29 = vector.broadcast %c1_i32 : i32 to vector<8x128xi32>
    %30 = arith.cmpi sge, %28, %29 : vector<8x128xi32>
    %c9_i32 = arith.constant 9 : i32
    %31 = vector.broadcast %c9_i32 : i32 to vector<8x128xi32>
    %32 = arith.cmpi slt, %28, %31 : vector<8x128xi32>
    %33 = arith.andi %30, %32 : vector<8x128xi1>
    %cst_23 = arith.constant 0.000000e+00 : f32
    %34 = vector.broadcast %cst_23 : f32 to vector<8x128xf32>
    %35 = arith.select %33, %26, %34 : vector<8x128xi1>, vector<8x128xf32>
    %cst_24 = arith.constant dense<0.000000e+00> : vector<8xf32>
    %36 = vector.multi_reduction <add>, %35, %cst_24 [1] : vector<8x128xf32> to vector<8xf32>
    %37 = vector.shape_cast %36 : vector<8xf32> to vector<8x1xf32>
    %cst_25 = arith.constant 1.250000e-01 : f32
    %38 = vector.broadcast %cst_25 : f32 to vector<8x1xf32>
    %39 = arith.mulf %37, %38 : vector<8x1xf32>
    %40 = vector.broadcast %39 : vector<8x1xf32> to vector<8x128xf32>
    %41 = arith.subf %26, %40 : vector<8x128xf32>
    %42 = vector.broadcast %27 : vector<8x1xf32> to vector<8x128xf32>
    %43 = arith.addf %42, %41 : vector<8x128xf32>
    %c0_26 = arith.constant 0 : index
    %c0_27 = arith.constant 0 : index
    %44 = vector.load %arg10[%c0_26, %c0_27] : memref<8x128xf32, #tpu.memory_space<vmem>>, vector<8x128xf32>
    tpu.vector_store %arg10[%c0_26, %c0_27], %43 {strides = array<i32>} : memref<8x128xf32, #tpu.memory_space<vmem>>, vector<8x128xf32>,
    return
  }
  func.func @transform_0(%arg0: i32) -> (i32, i32) {
    %c0_i32 = arith.constant 0 : i32
    %c0_i32_0 = arith.constant 0 : i32
    return %arg0, %c0_i32 : i32, i32
  }
  func.func @transform_1(%arg0: i32) -> (i32, i32) {
    %c0_i32 = arith.constant 0 : i32
    %c0_i32_0 = arith.constant 0 : i32
    %c0_i32_1 = arith.constant 0 : i32
    return %c0_i32, %c0_i32_0 : i32, i32
  }
  func.func @transform_2(%arg0: i32) -> (i32, i32) {
    %c0_i32 = arith.constant 0 : i32
    %c0_i32_0 = arith.constant 0 : i32
    %c0_i32_1 = arith.constant 0 : i32
    return %c0_i32, %c0_i32_0 : i32, i32
  }
  func.func @transform_3(%arg0: i32) -> (i32, i32) {
    %c0_i32 = arith.constant 0 : i32
    %c0_i32_0 = arith.constant 0 : i32
    %c0_i32_1 = arith.constant 0 : i32
    return %c0_i32, %c0_i32_0 : i32, i32
  }
  func.func @transform_4(%arg0: i32) -> (i32, i32) {
    %c0_i32 = arith.constant 0 : i32
    %c0_i32_0 = arith.constant 0 : i32
    %c0_i32_1 = arith.constant 0 : i32
    return %c0_i32, %c0_i32_0 : i32, i32
  }
  func.func @transform_5(%arg0: i32) -> (i32, i32) {
    %c0_i32 = arith.constant 0 : i32
    %c0_i32_0 = arith.constant 0 : i32
    %c0_i32_1 = arith.constant 0 : i32
    return %c0_i32, %c0_i32_0 : i32, i32
  }
  func.func @transform_6(%arg0: i32) -> (i32, i32) {
    %c0_i32 = arith.constant 0 : i32
    %c0_i32_0 = arith.constant 0 : i32
    %c0_i32_1 = arith.constant 0 : i32
    return %c0_i32, %c0_i32_0 : i32, i32
  }
  func.func @transform_7(%arg0: i32) -> (i32, i32) {
    %c0_i32 = arith.constant 0 : i32
    %c0_i32_0 = arith.constant 0 : i32
    %c0_i32_1 = arith.constant 0 : i32
    return %c0_i32, %c0_i32_0 : i32, i32
  }
  func.func @transform_8(%arg0: i32) -> (i32, i32) {
    %c0_i32 = arith.constant 0 : i32
    %c0_i32_0 = arith.constant 0 : i32
    %c0_i32_1 = arith.constant 0 : i32
    return %c0_i32, %c0_i32_0 : i32, i32
  }
  func.func @transform_9(%arg0: i32) -> (i32, i32) {
    %c0_i32 = arith.constant 0 : i32
    %c0_i32_0 = arith.constant 0 : i32
    return %arg0, %c0_i32 : i32, i32
  }
}

</mosaic_0001>

<llo_original>
// kernel: tpu_custom_call.1
$region0: #{tpu_custom_call.1}
  #allocation0 [shape = 'u32[]', space=smem, size = 0x4, offset = 0x4, fixed_abs, tag = 'smem constant byte address 0x4 - core index']
  #allocation1 [shape = 'u32[72,128]{1,0:T(1,128)}', space=vmem, size = 0x9000, scoped, tag = 'internal scratch']
  %s0 = inlined_call_operand.hbm [shape: f32[8,16], index: 0, kind: input, shape index: {}]
  %s1 = inlined_call_operand.hbm [shape: f32[16,64], index: 1, kind: input, shape index: {}]
  %s2 = inlined_call_operand.vmem [shape: f32[1,64], index: 2, kind: input, shape index: {}]
  %s3 = inlined_call_operand.hbm [shape: f32[64,128], index: 3, kind: input, shape index: {}]
  %s4 = inlined_call_operand.vmem [shape: f32[1,128], index: 4, kind: input, shape index: {}]
  %s5 = inlined_call_operand.hbm [shape: f32[128,128], index: 5, kind: input, shape index: {}]
  %s6 = inlined_call_operand.vmem [shape: f32[1,128], index: 6, kind: input, shape index: {}]
  %s7 = inlined_call_operand.hbm [shape: f32[128,128], index: 7, kind: input, shape index: {}]
  %s8 = inlined_call_operand.vmem [shape: f32[1,128], index: 8, kind: input, shape index: {}]
  %s9 = inlined_call_operand.hbm [shape: f32[8,128], index: 9, kind: output, shape index: {}]
  %s10 = sld [smem:[#allocation0]]
  $region66: #{tpu_custom_call.1} parent=0
    _
  %s12 = ssub.s32 1, %s10
  %s13 = scalar_select 0, %s12, %s10
  $region1: #{tpu_custom_call.1} parent=0
    #allocation2 [shape = 'u8[4096]{0}', space=vmem, size = 0x1000, scoped, tag = 'input window, operand 0, single buffered']
    #allocation3 [shape = 's32[1]{0}', space=sflag, size = 0x4, scoped, tag = 'scoped memory for tpu_custom_call.1']
    #allocation4 [shape = 's32[1]{0}', space=sflag, size = 0x4, scoped, tag = 'scoped memory for tpu_custom_call.1']
    #allocation5 [shape = 'u8[8192]{0}', space=vmem, size = 0x2000, scoped, tag = 'input window, operand 1, single buffered']
    #allocation6 [shape = 's32[1]{0}', space=sflag, size = 0x4, scoped, tag = 'scoped memory for tpu_custom_call.1']
    #allocation7 [shape = 'u8[32768]{0}', space=vmem, size = 0x8000, scoped, tag = 'input window, operand 3, single buffered']
    #allocation8 [shape = 'u8[65536]{0}', space=vmem, size = 0x10000, scoped, tag = 'input window, operand 5, single buffered']
    #allocation9 [shape = 's32[1]{0}', space=sflag, size = 0x4, scoped, tag = 'scoped memory for tpu_custom_call.1']
    #allocation10 [shape = 'u8[65536]{0}', space=vmem, size = 0x10000, scoped, tag = 'input window, operand 7, single buffered']
    #allocation11 [shape = 'u8[4096]{0}', space=vmem, size = 0x1000, scoped, tag = 'output window, operand 0, single buffered']
    %14 = vsyncpa [#allocation3], 0
    %15 = vsyncpa [#allocation6], 0
    %16 = vsyncpa [#allocation9], 0
    %17 = vsyncpa [#allocation4], 0
    // Predicated region
    $region2: #{tpu_custom_call.1} parent=1 // pred_check
      _
    $region3: #{tpu_custom_call.1} parent=1 // pred_check_branch
      %19 = sbr.rel (0) target = $region5
    $region4: #{tpu_custom_call.1} parent=1 // pred_region
      %21 = vsyncadd [#allocation3], 0
      %s23 = sshll.u32 %s0, 4
      %s24 = int_to_ptr.hbm [resolvable:$true] %s23
      %s25 = sshll.u32 [#allocation2], 4
      %s26 = int_to_ptr.vmem [resolvable:$true] %s25
      %28 = dma.hbm_to_vmem [thread:$0]  %s24, 128, %s26, [#allocation3]
    $region5: #{tpu_custom_call.1} parent=1 // pred_fallthru
      _
    // Predicated region
    $region6: #{tpu_custom_call.1} parent=1 // pred_check
      _
    $region7: #{tpu_custom_call.1} parent=1 // pred_check_branch
      %30 = sbr.rel (0) target = $region9
    $region8: #{tpu_custom_call.1} parent=1 // pred_region
      %32 = vsyncadd [#allocation6], 0
      %s33 = sshll.u32 %s1, 4
      %s34 = int_to_ptr.hbm [resolvable:$true] %s33
      %s35 = sshll.u32 [#allocation5], 4
      %s36 = int_to_ptr.vmem [resolvable:$true] %s35
      %41 = dma.hbm_to_vmem [thread:$0]  %s34, 256, %s36, [#allocation6], 128, 128, 8
    $region9: #{tpu_custom_call.1} parent=1 // pred_fallthru
      _
    // Predicated region
    $region10: #{tpu_custom_call.1} parent=1 // pred_check
      _
    $region11: #{tpu_custom_call.1} parent=1 // pred_check_branch
      %43 = sbr.rel (0) target = $region13
    $region12: #{tpu_custom_call.1} parent=1 // pred_region
      _
    $region13: #{tpu_custom_call.1} parent=1 // pred_fallthru
      _
    // Predicated region
    $region14: #{tpu_custom_call.1} parent=1 // pred_check
      _
    $region15: #{tpu_custom_call.1} parent=1 // pred_check_branch
      %45 = sbr.rel (0) target = $region17
    $region16: #{tpu_custom_call.1} parent=1 // pred_region
      %47 = vsyncadd [#allocation6], 0
      %s48 = sshll.u32 %s3, 4
      %s49 = int_to_ptr.hbm [resolvable:$true] %s48
      %s50 = sshll.u32 [#allocation7], 4
      %s51 = int_to_ptr.vmem [resolvable:$true] %s50
      %56 = dma.hbm_to_vmem [thread:$0]  %s49, 1024, %s51, [#allocation6], 128, 128, 8
    $region17: #{tpu_custom_call.1} parent=1 // pred_fallthru
      _
    // Predicated region
    $region18: #{tpu_custom_call.1} parent=1 // pred_check
      _
    $region19: #{tpu_custom_call.1} parent=1 // pred_check_branch
      %58 = sbr.rel (0) target = $region21
    $region20: #{tpu_custom_call.1} parent=1 // pred_region
      _
    $region21: #{tpu_custom_call.1} parent=1 // pred_fallthru
      _
    // Predicated region
    $region22: #{tpu_custom_call.1} parent=1 // pred_check
      _
    $region23: #{tpu_custom_call.1} parent=1 // pred_check_branch
      %60 = sbr.rel (0) target = $region25
    $region24: #{tpu_custom_call.1} parent=1 // pred_region
      %62 = vsyncadd [#allocation9], 0
      %s63 = sshll.u32 %s5, 4
      %s64 = int_to_ptr.hbm [resolvable:$true] %s63
      %s65 = sshll.u32 [#allocation8], 4
      %s66 = int_to_ptr.vmem [resolvable:$true] %s65
      %71 = dma.hbm_to_vmem [thread:$0]  %s64, 2048, %s66, [#allocation9], 128, 128, 8
    $region25: #{tpu_custom_call.1} parent=1 // pred_fallthru
      _
    // Predicated region
    $region26: #{tpu_custom_call.1} parent=1 // pred_check
      _
    $region27: #{tpu_custom_call.1} parent=1 // pred_check_branch
      %73 = sbr.rel (0) target = $region29
    $region28: #{tpu_custom_call.1} parent=1 // pred_region
      _
    $region29: #{tpu_custom_call.1} parent=1 // pred_fallthru
      _
    // Predicated region
    $region30: #{tpu_custom_call.1} parent=1 // pred_check
      _
    $region31: #{tpu_custom_call.1} parent=1 // pred_check_branch
      %75 = sbr.rel (0) target = $region33
    $region32: #{tpu_custom_call.1} parent=1 // pred_region
      %77 = vsyncadd [#allocation9], 0
      %s78 = sshll.u32 %s7, 4
      %s79 = int_to_ptr.hbm [resolvable:$true] %s78
      %s80 = sshll.u32 [#allocation10], 4
      %s81 = int_to_ptr.vmem [resolvable:$true] %s80
      %86 = dma.hbm_to_vmem [thread:$0]  %s79, 2048, %s81, [#allocation9], 128, 128, 8
    $region33: #{tpu_custom_call.1} parent=1 // pred_fallthru
      _
    // Predicated region
    $region34: #{tpu_custom_call.1} parent=1 // pred_check
      _
    $region35: #{tpu_custom_call.1} parent=1 // pred_check_branch
      %88 = sbr.rel (0) target = $region37
    $region36: #{tpu_custom_call.1} parent=1 // pred_region
      _
    $region37: #{tpu_custom_call.1} parent=1 // pred_fallthru
      _
    // Predicated region
    $region38: #{tpu_custom_call.1} parent=1 // pred_check
      _
    $region39: #{tpu_custom_call.1} parent=1 // pred_check_branch
      %90 = sbr.rel (0) target = $region41
    $region40: #{tpu_custom_call.1} parent=1 // pred_region
      %92 = dma.done [#allocation3], 128
    $region41: #{tpu_custom_call.1} parent=1 // pred_fallthru
      _
    // Predicated region
    $region42: #{tpu_custom_call.1} parent=1 // pred_check
      _
    $region43: #{tpu_custom_call.1} parent=1 // pred_check_branch
      %94 = sbr.rel (0) target = $region45
    $region44: #{tpu_custom_call.1} parent=1 // pred_region
      %96 = dma.done [#allocation6], 256
    $region45: #{tpu_custom_call.1} parent=1 // pred_fallthru
      _
    // Predicated region
    $region46: #{tpu_custom_call.1} parent=1 // pred_check
      _
    $region47: #{tpu_custom_call.1} parent=1 // pred_check_branch
      %98 = sbr.rel (0) target = $region49
    $region48: #{tpu_custom_call.1} parent=1 // pred_region
      %100 = dma.done [#allocation6], 1024
    $region49: #{tpu_custom_call.1} parent=1 // pred_fallthru
      _
    // Predicated region
    $region50: #{tpu_custom_call.1} parent=1 // pred_check
      _
    $region51: #{tpu_custom_call.1} parent=1 // pred_check_branch
      %102 = sbr.rel (0) target = $region53
    $region52: #{tpu_custom_call.1} parent=1 // pred_region
      %104 = dma.done [#allocation9], 2048
    $region53: #{tpu_custom_call.1} parent=1 // pred_fallthru
      _
    // Predicated region
    $region54: #{tpu_custom_call.1} parent=1 // pred_check
      _
    $region55: #{tpu_custom_call.1} parent=1 // pred_check_branch
      %106 = sbr.rel (0) target = $region57
    $region56: #{tpu_custom_call.1} parent=1 // pred_region
      %108 = dma.done [#allocation9], 2048
    $region57: #{tpu_custom_call.1} parent=1 // pred_fallthru
      _
    %v109 = vld [vmem:[#allocation2] sm:$0xff]
    %v110 = vld [vmem:[#allocation5] sm:$0xff]
    %v111 = vld [vmem:[#allocation5 + $0x8] sm:$0xff]
    %v112 = vld [vmem:[%s2] sm:$0x1]
    %v114 = vperm.slane %v112, 0
    %vm116 = vcmask 130048
    %v118 = vsel %vm116, %v109, 0
    %120 = vmatpush.msra.mxu0 0.0
    %121 = vmatpush.msra.mxu0 0.0
    %122 = vmatpush.msra.mxu0 0.0
    %123 = vmatpush.msra.mxu0 0.0
    %124 = vmatpush.msra.mxu0 0.0
    %125 = vmatpush.msra.mxu0 0.0
    %126 = vmatpush.msra.mxu0 0.0
    %127 = vmatpush.msra.mxu0 0.0
    %128 = vmatpush.msra.mxu0 0.0
    %129 = vmatpush.msra.mxu0 0.0
    %130 = vmatpush.msra.mxu0 0.0
    %131 = vmatpush.msra.mxu0 0.0
    %132 = vmatpush.msra.mxu0 0.0
    %133 = vmatpush.msra.mxu0 0.0
    %134 = vmatpush.msra.mxu0 %v111
    %135 = vmatpush.msra.mxu0 %v110
    %136 = vmatmul.f32.gmra.mxu0 %v118
    %v137 = vpop.f32.mrf.mxu0
    %v138 = vadd.f32 %v114, %v137
    %139 = vdwg.mxu0
    %v140 = vmax.f32 %v138, 0.0
    %v141 = vld [vmem:[#allocation7] sm:$0xff]
    %v142 = vld [vmem:[#allocation7 + $0x8] sm:$0xff]
    %v143 = vld [vmem:[#allocation7 + $0x10] sm:$0xff]
    %v144 = vld [vmem:[#allocation7 + $0x18] sm:$0xff]
    %v145 = vld [vmem:[#allocation7 + $0x20] sm:$0xff]
    %v146 = vld [vmem:[#allocation7 + $0x28] sm:$0xff]
    %v147 = vld [vmem:[#allocation7 + $0x30] sm:$0xff]
    %v148 = vld [vmem:[#allocation7 + $0x38] sm:$0xff]
    %v149 = vld [vmem:[%s4] sm:$0x1]
    %v151 = vperm.slane %v149, 0
    %vm153 = vcmask 523264
    %v155 = vsel %vm153, %v140, 0
    %157 = vmatpush.msra.mxu0 0.0
    %158 = vmatpush.msra.mxu0 0.0
    %159 = vmatpush.msra.mxu0 0.0
    %160 = vmatpush.msra.mxu0 0.0
    %161 = vmatpush.msra.mxu0 0.0
    %162 = vmatpush.msra.mxu0 0.0
    %163 = vmatpush.msra.mxu0 0.0
    %164 = vmatpush.msra.mxu0 0.0
    %165 = vmatpush.msra.mxu0 %v148
    %166 = vmatpush.msra.mxu0 %v147
    %167 = vmatpush.msra.mxu0 %v146
    %168 = vmatpush.msra.mxu0 %v145
    %169 = vmatpush.msra.mxu0 %v144
    %170 = vmatpush.msra.mxu0 %v143
    %171 = vmatpush.msra.mxu0 %v142
    %172 = vmatpush.msra.mxu0 %v141
    %173 = vmatmul.f32.gmra.mxu0 %v155
    %v174 = vpop.f32.mrf.mxu0
    %v175 = vadd.f32 %v151, %v174
    %176 = vdwg.mxu0
    %v177 = vmax.f32 %v175, 0.0
    %v178 = vld [vmem:[#allocation8] sm:$0xff]
    %v179 = vld [vmem:[#allocation8 + $0x8] sm:$0xff]
    %v180 = vld [vmem:[#allocation8 + $0x10] sm:$0xff]
    %v181 = vld [vmem:[#allocation8 + $0x18] sm:$0xff]
    %v182 = vld [vmem:[#allocation8 + $0x20] sm:$0xff]
    %v183 = vld [vmem:[#allocation8 + $0x28] sm:$0xff]
    %v184 = vld [vmem:[#allocation8 + $0x30] sm:$0xff]
    %v185 = vld [vmem:[#allocation8 + $0x38] sm:$0xff]
    %v186 = vld [vmem:[#allocation8 + $0x40] sm:$0xff]
    %v187 = vld [vmem:[#allocation8 + $0x48] sm:$0xff]
    %v188 = vld [vmem:[#allocation8 + $0x50] sm:$0xff]
    %v189 = vld [vmem:[#allocation8 + $0x58] sm:$0xff]
    %v190 = vld [vmem:[#allocation8 + $0x60] sm:$0xff]
    %v191 = vld [vmem:[#allocation8 + $0x68] sm:$0xff]
    %v192 = vld [vmem:[#allocation8 + $0x70] sm:$0xff]
    %v193 = vld [vmem:[#allocation8 + $0x78] sm:$0xff]
    %v194 = vld [vmem:[%s6] sm:$0x1]
    %v196 = vperm.slane %v194, 0
    %198 = vmatpush.msra.mxu0 %v193
    %199 = vmatpush.msra.mxu0 %v192
    %200 = vmatpush.msra.mxu0 %v191
    %201 = vmatpush.msra.mxu0 %v190
    %202 = vmatpush.msra.mxu0 %v189
    %203 = vmatpush.msra.mxu0 %v188
    %204 = vmatpush.msra.mxu0 %v187
    %205 = vmatpush.msra.mxu0 %v186
    %206 = vmatpush.msra.mxu0 %v185
    %207 = vmatpush.msra.mxu0 %v184
    %208 = vmatpush.msra.mxu0 %v183
    %209 = vmatpush.msra.mxu0 %v182
    %210 = vmatpush.msra.mxu0 %v181
    %211 = vmatpush.msra.mxu0 %v180
    %212 = vmatpush.msra.mxu0 %v179
    %213 = vmatpush.msra.mxu0 %v178
    %214 = vmatmul.f32.gmra.mxu0 %v177
    %v215 = vpop.f32.mrf.mxu0
    %v216 = vadd.f32 %v196, %v215
    %217 = vdwg.mxu0
    %v218 = vmax.f32 %v216, 0.0
    %v219 = vld [vmem:[#allocation10] sm:$0xff]
    %v220 = vld [vmem:[#allocation10 + $0x8] sm:$0xff]
    %v221 = vld [vmem:[#allocation10 + $0x10] sm:$0xff]
    %v222 = vld [vmem:[#allocation10 + $0x18] sm:$0xff]
    %v223 = vld [vmem:[#allocation10 + $0x20] sm:$0xff]
    %v224 = vld [vmem:[#allocation10 + $0x28] sm:$0xff]
    %v225 = vld [vmem:[#allocation10 + $0x30] sm:$0xff]
    %v226 = vld [vmem:[#allocation10 + $0x38] sm:$0xff]
    %v227 = vld [vmem:[#allocation10 + $0x40] sm:$0xff]
    %v228 = vld [vmem:[#allocation10 + $0x48] sm:$0xff]
    %v229 = vld [vmem:[#allocation10 + $0x50] sm:$0xff]
    %v230 = vld [vmem:[#allocation10 + $0x58] sm:$0xff]
    %v231 = vld [vmem:[#allocation10 + $0x60] sm:$0xff]
    %v232 = vld [vmem:[#allocation10 + $0x68] sm:$0xff]
    %v233 = vld [vmem:[#allocation10 + $0x70] sm:$0xff]
    %v234 = vld [vmem:[#allocation10 + $0x78] sm:$0xff]
    %v235 = vld [vmem:[%s8] sm:$0x1]
    %v237 = vperm.slane %v235, 0
    %239 = vmatpush.msra.mxu0 %v234
    %240 = vmatpush.msra.mxu0 %v233
    %241 = vmatpush.msra.mxu0 %v232
    %242 = vmatpush.msra.mxu0 %v231
    %243 = vmatpush.msra.mxu0 %v230
    %244 = vmatpush.msra.mxu0 %v229
    %245 = vmatpush.msra.mxu0 %v228
    %246 = vmatpush.msra.mxu0 %v227
    %247 = vmatpush.msra.mxu0 %v226
    %248 = vmatpush.msra.mxu0 %v225
    %249 = vmatpush.msra.mxu0 %v224
    %250 = vmatpush.msra.mxu0 %v223
    %251 = vmatpush.msra.mxu0 %v222
    %252 = vmatpush.msra.mxu0 %v221
    %253 = vmatpush.msra.mxu0 %v220
    %254 = vmatpush.msra.mxu0 %v219
    %255 = vmatmul.f32.gmra.mxu0 %v218
    %v256 = vpop.f32.mrf.mxu0
    %v257 = vadd.f32 %v237, %v256
    %258 = vdwg.mxu0
    %v259 = vlaneseq
    %v260 = vand.u32 %v259, 127
    %vm261 = vcmp.ge.s32.totalorder %v260, 1
    %vm262 = vcmp.lt.s32.totalorder %v260, 9
    %vm263 = vmand %vm261, %vm262
    %v264 = vsel %vm263, %v257, 0.0
    %265 = vadd.xlane.f32.xlu0 %v264
    %v266 = vpop.xlane.xlu0 %265
    %v267 = vmul.f32 %v266, 0.125
    %v268 = vsub.f32 %v257, %v267
    %270 = vset.pattern.permute.xlu0 0
    %271 = vperm.xlu0 %270, %v257
    %v272 = vpop.permute.xlu0 %271
    %v274 = vadd.f32 %v272, %v268
    %275 = vst [vmem:[#allocation11] sm:$0xff] %v274
    // Predicated region
    $region58: #{tpu_custom_call.1} parent=1 // pred_check
      _
    $region59: #{tpu_custom_call.1} parent=1 // pred_check_branch
      %277 = sbr.rel (0) target = $region61
    $region60: #{tpu_custom_call.1} parent=1 // pred_region
      %279 = vsyncadd [#allocation4], 0
      %s281 = sshll.u32 [#allocation11], 4
      %s282 = int_to_ptr.vmem [resolvable:$true] %s281
      %s283 = sshll.u32 %s9, 4
      %s284 = int_to_ptr.hbm [resolvable:$true] %s283
      %286 = dma.vmem_to_hbm [thread:$0]  %s282, 128, %s284, [#allocation4]
    $region61: #{tpu_custom_call.1} parent=1 // pred_fallthru
      _
    // Predicated region
    $region62: #{tpu_custom_call.1} parent=1 // pred_check
      _
    $region63: #{tpu_custom_call.1} parent=1 // pred_check_branch
      %288 = sbr.rel (0) target = $region65
    $region64: #{tpu_custom_call.1} parent=1 // pred_region
      %290 = dma.done [#allocation4], 128
    $region65: #{tpu_custom_call.1} parent=1 // pred_fallthru
      _
    %291 = vsyncpa [#allocation3], 1
    %292 = vsyncpa [#allocation6], 1
    %293 = vsyncpa [#allocation9], 1
    %294 = vsyncpa [#allocation4], 1

</llo_original>
